<compile_context>
chip_gen: v7x
topology: tpu7x:2x2x1
jax: 0.10.0
libtpu: 0.0.40
codegen_flags: <defaults>
</compile_context>

<pallas_src>
import functools

import numpy as np
import jax
import jax.numpy as jnp
from jax.experimental import pallas as pl
from jax.experimental.pallas import tpu as pltpu


def _round_up(x, m):
    return ((x + m - 1) // m) * m


# -----------------------------------------------------------------------------
# Pallas kernel: per-simplex filtration value = max over the K gathered rows
# -----------------------------------------------------------------------------
def _simplex_max_kernel(fv_ref, out_ref):
    # fv_ref : (K, TS) float32 — row k holds sign*f of the k-th vertex of each
    #          simplex (padding rows repeat vertex 0 of that simplex).
    # out_ref: (1, TS) float32 — lane-dense running result.
    acc = fv_ref[0:1, :]
    for k in range(1, fv_ref.shape[0]):          # K is tiny & static → unrolled VPU maxes
        acc = jnp.maximum(acc, fv_ref[k:k + 1, :])
    out_ref[...] = acc


def _simplex_max(fv, *, ts):
    """fv: (K, Sp) f32 gathered vertex values; returns (1, Sp) f32 filtration."""
    K, Sp = fv.shape
    assert Sp % ts == 0
    return pl.pallas_call(
        _simplex_max_kernel,
        out_shape=jax.ShapeDtypeStruct((1, Sp), jnp.float32),
        grid=(Sp // ts,),
        in_specs=[pl.BlockSpec((K, ts), lambda i: (0, i))],       # K == full dim
        out_specs=pl.BlockSpec((1, ts), lambda i: (0, i)),        # lane-dense slab
        compiler_params=pltpu.CompilerParams(
            dimension_semantics=("parallel",),          # simplex tiles shard across TCs
            vmem_limit_bytes=32 * 1024 * 1024,          # safe under v7x 64 MiB physical
        ),
        cost_estimate=pl.CostEstimate(
            flops=K * Sp, transcendentals=0, bytes_accessed=(K + 1) * Sp * 4),
    )(fv)


@functools.partial(jax.jit, static_argnames=("n_simplices", "ts"))
def _filtration_values(f, sign, vidx, *, n_simplices, ts):
    """Per-simplex lower-star filtration: filt[s] = max_{v in s} sign * f[v]."""
    g = jnp.asarray(f, jnp.float32).reshape(-1) * sign
    # TODO(synk): the gather runs as a tiny XLA gather (K*Sp elements) feeding
    # the Pallas kernel; Mosaic has no general in-kernel vector gather across a
    # full VMEM column, so only the K-way max runs inside Pallas.
    fv = jnp.take(g, vidx, axis=0)                 # (K, Sp)
    filt = _simplex_max(fv, ts=ts)                 # (1, Sp)  Pallas hot path
    return filt[0, :n_simplices]                   # drop padded simplex columns


# -----------------------------------------------------------------------------
# Simplicial complex (glue / setup, plain python)
# -----------------------------------------------------------------------------
class SimplicialComplex:
    def __init__(self):
        self.simplices = []  # list of tuples of sorted vertex indices

    def append(self, s):
        self.simplices.append(tuple(sorted(s)))

    def initialize(self):
        self.index = {frozenset(s): i for i, s in enumerate(self.simplices)}
        self.dims = np.array([len(s) - 1 for s in self.simplices], dtype=np.int64)
        self.nv = max(max(s) for s in self.simplices) + 1
        self.boundaries = []
        for s in self.simplices:
            if len(s) == 1:
                self.boundaries.append([])
            else:
                faces = []
                for k in range(len(s)):
                    face = frozenset(s[:k] + s[k + 1:])
                    faces.append(self.index[face])
                self.boundaries.append(faces)


def grid_complex(n):
    """Triangulated n x n grid: vertices, edges, triangles (acyclic complex)."""
    cpx = SimplicialComplex()

    def vid(i, j):
        return i * n + j

    for i in range(n):
        for j in range(n):
            cpx.append((vid(i, j),))
    for i in range(n):
        for j in range(n):
            if j + 1 < n:
                cpx.append((vid(i, j), vid(i, j + 1)))
            if i + 1 < n:
                cpx.append((vid(i, j), vid(i + 1, j)))
            if i + 1 < n and j + 1 < n:
                cpx.append((vid(i, j), vid(i + 1, j + 1)))  # diagonal
                cpx.append((vid(i, j), vid(i, j + 1), vid(i + 1, j + 1)))
                cpx.append((vid(i, j), vid(i + 1, j), vid(i + 1, j + 1)))
    return cpx


# -----------------------------------------------------------------------------
# Persistence (standard Z/2 boundary-matrix column reduction)
# -----------------------------------------------------------------------------
def _persistence_diagrams(filt, dims, boundaries, maxdim):
    # TODO(synk): boundary-matrix reduction is sequential / data-dependent (no
    # clean Pallas equivalent) — runs on host in numpy, which also breaks
    # autodiff w.r.t. f through the diagrams.
    S = len(filt)
    order = np.lexsort((dims, filt))  # primary key: filtration, tie-break: dim
    pos = np.empty(S, dtype=np.int64)
    pos[order] = np.arange(S)

    columns = []
    low_to_col = {}
    pairs = []               # (birth simplex idx, death simplex idx)
    paired_birth_pos = set()

    for j in range(S):
        s_idx = int(order[j])
        col = set(int(pos[b]) for b in boundaries[s_idx])
        while col:
            low = max(col)
            other = low_to_col.get(low)
            if other is None:
                break
            col ^= columns[other]
        columns.append(col)
        if col:
            low = max(col)
            low_to_col[low] = j
            pairs.append((int(order[low]), s_idx))
            paired_birth_pos.add(low)

    dgms = []
    for k in range(maxdim + 1):
        pts = []
        for b, d in pairs:
            if dims[b] == k:
                pts.append((float(filt[b]), float(filt[d])))
        for j in range(S):
            s_idx = int(order[j])
            if dims[s_idx] == k and not columns[j] and j not in paired_birth_pos:
                pts.append((float(filt[s_idx]), np.inf))   # essential class
        if pts:
            dgms.append(np.asarray(pts, dtype=np.float32))
        else:
            dgms.append(np.zeros((0, 2), dtype=np.float32))
    return dgms


# -----------------------------------------------------------------------------
# LevelSetLayer
# -----------------------------------------------------------------------------
class LevelSetLayer:
    """Level set persistence layer over an arbitrary simplicial complex."""

    _TS_MAX = 2048   # lane-axis (simplex) tile cap; multiple of 128

    def __init__(self, complex, maxdim=1, sublevel=True, alg='hom'):
        self.complex = complex
        self.maxdim = maxdim
        self.sublevel = sublevel
        self.alg = alg  # 'hom' / 'cohom' give identical diagrams; reduction fixed here
        self.complex.initialize()

        simplices = self.complex.simplices
        S = len(simplices)
        V = self.complex.nv
        K = max(len(s) for s in simplices)

        # Tile selection: big tiles amortize per-step pipeline overhead, but
        # keep >= 2 simplex tiles whenever possible so v7x's two TensorCores
        # both get work on the "parallel" axis.
        Sp0 = _round_up(S, 128)
        ts = min(self._TS_MAX, Sp0)
        if Sp0 // ts < 2 and Sp0 >= 256:
            ts = _round_up(Sp0 // 2, 128)
        Sp = _round_up(Sp0, ts)

        # (K, Sp) vertex-index table.  Padding slots within a simplex repeat
        # its first vertex (so the max is unaffected, no -inf sentinels);
        # padded simplex columns beyond S point at vertex 0 and are sliced off.
        vidx = np.zeros((K, Sp), dtype=np.int32)
        for i, s in enumerate(simplices):
            for k in range(K):
                vidx[k, i] = s[k] if k < len(s) else s[0]
        self._vidx = jnp.asarray(vidx)

        self._S, self._V, self._Sp, self._K, self._TS = S, V, Sp, K, ts

    def _filtration(self, f, sign):
        """Per-simplex filtration values (length S), hot path on TPU."""
        return _filtration_values(
            jnp.asarray(f, dtype=jnp.float32),
            jnp.float32(sign),
            self._vidx,
            n_simplices=self._S,
            ts=self._TS,
        )

    def forward(self, f):
        sign = 1.0 if self.sublevel else -1.0
        filt_dev = self._filtration(f, sign)                    # jitted gather + Pallas max
        filt = np.asarray(jax.device_get(filt_dev)).astype(np.float64)

        dgms_np = _persistence_diagrams(
            filt, self.complex.dims, self.complex.boundaries, self.maxdim
        )
        dgms = tuple(jnp.asarray(d) for d in dgms_np)
        if self.sublevel:
            return (dgms, True)
        else:
            dgms = tuple(-dgm for dgm in dgms)
            return (dgms, False)

    __call__ = forward


# -----------------------------------------------------------------------------
# Demo
# -----------------------------------------------------------------------------
if __name__ == "__main__":
    n = 4  # 4x4 grid -> 16 vertices, 33 edges, 18 triangles
    cpx = grid_complex(n)

    key = jax.random.PRNGKey(0)
    f = jax.random.normal(key, (n * n,), dtype=jnp.float32)

    layer_sub = LevelSetLayer(cpx, maxdim=1, sublevel=True)

    # Sanity-check the Pallas filtration path against a host reference.
    filt_dev = layer_sub._filtration(f, 1.0)
    jax.block_until_ready(filt_dev)
    f_np = np.asarray(jax.device_get(f))
    filt_ref = np.array([max(f_np[v] for v in s) for s in cpx.simplices], np.float32)
    np.testing.assert_allclose(np.asarray(jax.device_get(filt_dev)), filt_ref,
                               rtol=1e-6, atol=1e-6)

    dgms_sub, flag_sub = layer_sub(f)
    jax.block_until_ready(dgms_sub)

    layer_sup = LevelSetLayer(cpx, maxdim=1, sublevel=False)
    dgms_sup, flag_sup = layer_sup(f)
    jax.block_until_ready(dgms_sup)

    assert flag_sub is True and flag_sup is False
    assert len(dgms_sub) == 2 and len(dgms_sup) == 2
    assert all(d.shape[-1] == 2 for d in dgms_sub)

    print("KERNEL_OK")
</pallas_src>

<mosaic_0001>
module attributes {stable_mosaic.version = 11 : i64} {
  func.func @_simplex_max_kernel(%arg0: i32, %arg1: memref<3x128xf32, #tpu.memory_space<vmem>>, %arg2: memref<1x128xf32, #tpu.memory_space<vmem>>) attributes {dimension_semantics = [#tpu.dimension_semantics<parallel>], iteration_bounds = array<i64: 1>, scalar_prefetch = 0 : i64, scratch_operands = 0 : i64, tpu.core_type = #tpu.core_type<tc>, window_params = [{transform_indices = @transform_0, window_bounds = array<i64: 3, 128>}, {transform_indices = @transform_1, window_bounds = array<i64: 1, 128>}]} {
    %c0 = arith.constant 0 : index
    %c0_0 = arith.constant 0 : index
    %0 = vector.load %arg1[%c0, %c0_0] : memref<3x128xf32, #tpu.memory_space<vmem>>, vector<1x128xf32>
    %c1 = arith.constant 1 : index
    %c0_1 = arith.constant 0 : index
    %1 = vector.load %arg1[%c1, %c0_1] : memref<3x128xf32, #tpu.memory_space<vmem>>, vector<1x128xf32>
    %2 = arith.maximumf %0, %1 : vector<1x128xf32>
    %c2 = arith.constant 2 : index
    %c0_2 = arith.constant 0 : index
    %3 = vector.load %arg1[%c2, %c0_2] : memref<3x128xf32, #tpu.memory_space<vmem>>, vector<1x128xf32>
    %4 = arith.maximumf %2, %3 : vector<1x128xf32>
    %c0_3 = arith.constant 0 : index
    %c0_4 = arith.constant 0 : index
    %5 = vector.load %arg2[%c0_3, %c0_4] : memref<1x128xf32, #tpu.memory_space<vmem>>, vector<1x128xf32>
    tpu.vector_store %arg2[%c0_3, %c0_4], %4 {strides = array<i32>} : memref<1x128xf32, #tpu.memory_space<vmem>>, vector<1x128xf32>,
    return
  }
  func.func @transform_0(%arg0: i32) -> (i32, i32) {
    %c0_i32 = arith.constant 0 : i32
    %c0_i32_0 = arith.constant 0 : i32
    return %c0_i32, %arg0 : i32, i32
  }
  func.func @transform_1(%arg0: i32) -> (i32, i32) {
    %c0_i32 = arith.constant 0 : i32
    %c0_i32_0 = arith.constant 0 : i32
    return %c0_i32, %arg0 : i32, i32
  }
}

</mosaic_0001>

<llo_original>
// kernel: _filtration_values.1
$region0: #{_filtration_values.1}
  #allocation0 [shape = 'u32[]', space=smem, size = 0x4, offset = 0x4, fixed_abs, tag = 'smem constant byte address 0x4 - core index']
  #allocation1 [shape = 'u32[144,128]{1,0:T(1,128)}', space=vmem, size = 0x12000, scoped, tag = 'internal scratch']
  %s0 = inlined_call_operand.vmem [shape: f32[3,128], index: 0, kind: input, shape index: {}]
  %s1 = inlined_call_operand.vmem [shape: f32[1,128], index: 1, kind: output, shape index: {}]
  %s2 = sld [smem:[#allocation0]]
  $region14: #{_filtration_values.1} parent=0
    _
  %s4 = ssub.s32 1, %s2
  %s5 = scalar_select 0, %s4, %s2
  // Predicated region
  $region2: #{_filtration_values.1} parent=0 // pred_check
    _
  $region3: #{_filtration_values.1} parent=0 // pred_check_branch
    %7 = sbr.rel (0) target = $region5
  $region4: #{_filtration_values.1} parent=0 // pred_region
    _
  $region5: #{_filtration_values.1} parent=0 // pred_fallthru
    _
  %v8 = vld [vmem:[%s0] sm:$0x1]
  %v9 = vld [vmem:[%s0 + $0x1] sm:$0x1]
  %v10 = vmax.f32 %v8, %v9
  %v11 = vld [vmem:[%s0 + $0x2] sm:$0x1]
  %v12 = vmax.f32 %v10, %v11
  %13 = vst [vmem:[%s1] sm:$0x1] %v12
  // Predicated region
  $region6: #{_filtration_values.1} parent=0 // pred_check
    _
  $region7: #{_filtration_values.1} parent=0 // pred_check_branch
    %15 = sbr.rel (0) target = $region9
  $region8: #{_filtration_values.1} parent=0 // pred_region
    _
  $region9: #{_filtration_values.1} parent=0 // pred_fallthru
    _
  // Predicated region
  $region10: #{_filtration_values.1} parent=0 // pred_check
    _
  $region11: #{_filtration_values.1} parent=0 // pred_check_branch
    %17 = sbr.rel (0) target = $region13
  $region12: #{_filtration_values.1} parent=0 // pred_region
    _
  $region13: #{_filtration_values.1} parent=0 // pred_fallthru
    _

</llo_original>
